<compile_context>
chip_gen: v5e
topology: v5e:2x2
jax: 0.10.0
libtpu: 0.0.40
codegen_flags: <defaults>
</compile_context>

<pallas_src>
import functools

import jax
import jax.numpy as jnp
from jax.experimental import pallas as pl
from jax.experimental.pallas import tpu as pltpu

GAMMA = 2.0
# Deterministic alpha from the module's __init__: [403/871, 1 - 403/871]
ALPHA0 = 403.0 / 871.0
ALPHA1 = 1.0 - 403.0 / 871.0


def _round_up(x, m):
    return ((x + m - 1) // m) * m


def _focal_loss_kernel(x0_ref, x1_ref, lab_ref, out_ref, acc_ref, *,
                       n_valid, tiles_per_split, tile_rows, gamma,
                       alpha0, alpha1):
    # x0_ref : (TR, 128) float  VMEM -- class-0 logits tile (dense layout)
    # x1_ref : (TR, 128) float  VMEM -- class-1 logits tile
    # lab_ref: (TR, 128) int8   VMEM -- labels tile
    # out_ref: (1, 1, 1) f32    VMEM -- per-split partial sum (resident over i)
    # acc_ref: (TR, 128) f32    VMEM scratch accumulator
    s = pl.program_id(0)
    i = pl.program_id(1)

    @pl.when(i == 0)
    def _():
        acc_ref[...] = jnp.zeros_like(acc_ref)
        out_ref[...] = jnp.zeros_like(out_ref)

    x0 = x0_ref[...].astype(jnp.float32)
    x1 = x1_ref[...].astype(jnp.float32)
    is0 = lab_ref[...].astype(jnp.int32) == 0

    x_t = jnp.where(is0, x0, x1)                  # target-class logit
    x_o = jnp.where(is0, x1, x0)                  # other-class logit
    d = x_o - x_t

    # Numerically stable binary log-softmax:
    #   logpt = -softplus(d), pt = exp(logpt)  -> 3 EUP ops per element.
    ed = jnp.exp(-jnp.abs(d))                     # in (0, 1], never overflows
    logpt = -(jnp.maximum(d, 0.0) + jnp.log(1.0 + ed))
    pt = jnp.exp(logpt)

    # alpha.gather(0, target) with the fixed 2-entry alpha.
    at = jnp.where(is0, jnp.float32(alpha0), jnp.float32(alpha1))

    one_minus_pt = 1.0 - pt
    if gamma == 2.0:                              # explicit square, no pow()
        focal = one_minus_pt * one_minus_pt
    else:
        focal = one_minus_pt ** gamma
    loss = -focal * (logpt * at)                  # (TR, 128)

    # Logical (unclamped) tile position -> global flat sample offset.
    tile = s * tiles_per_split + i
    tile_size = tile_rows * 128
    tile_start = tile * tile_size

    # Steady state: no mask at all.
    @pl.when(tile_start + tile_size <= n_valid)
    def _():
        acc_ref[...] += loss

    # Tail / out-of-range tiles only: mask padded and duplicated lanes to 0.
    @pl.when(tile_start + tile_size > n_valid)
    def _():
        row = jax.lax.broadcasted_iota(jnp.int32, loss.shape, 0)
        col = jax.lax.broadcasted_iota(jnp.int32, loss.shape, 1)
        flat = tile_start + row * 128 + col
        acc_ref[...] += jnp.where(flat < n_valid, loss, 0.0)

    # One XLU reduction + scalar write per split, not per tile.
    @pl.when(i == pl.num_programs(1) - 1)
    def _():
        out_ref[...] = jnp.zeros_like(out_ref) + jnp.sum(acc_ref[...])


def multiview_focal_loss(logits, labels, mode="all", gamma=GAMMA,
                         tile_rows=4096, num_core_splits=2):
    """logits: (B, V, 2) float; labels: (B,) int. Returns scalar mean focal loss."""
    B, V, C = logits.shape
    if C != 2:
        # TODO(synk): generalize the dense-layout kernel to C > 2 (the module's
        # hard-coded 2-entry alpha implies a binary task, so C==2 is the spec).
        raise ValueError(f"kernel specialized for C == 2 classes, got C={C}")

    if mode == "all":
        # Class planes land directly in the dense (N,) layout; no transpose.
        x0 = logits[..., 0].reshape(-1)
        x1 = logits[..., 1].reshape(-1)
        # labels.unsqueeze(1).repeat(1, V).view(-1), stored as int8 (1 B/sample).
        lab = jnp.repeat(labels.astype(jnp.int8), V)
    elif mode == "one":
        x0 = logits[:, 0, 0]
        x1 = logits[:, 0, 1]
        lab = labels.astype(jnp.int8)
    else:
        raise ValueError(f"Invalid mode: {mode}")

    n = int(x0.shape[0])
    rows = int(pl.cdiv(n, 128))
    pad = rows * 128 - n
    if pad:
        # Pad only to the next multiple of 128 so the free row-major reshape to
        # (rows, 128) is legal; everything beyond `n` is masked in-kernel.
        x0 = jnp.pad(x0, (0, pad))
        x1 = jnp.pad(x1, (0, pad))
        lab = jnp.pad(lab, (0, pad))
    x0 = x0.reshape(rows, 128)
    x1 = x1.reshape(rows, 128)
    lab = lab.reshape(rows, 128)

    # Tile rows: multiple of 32 (int8 sublane tiling), capped by the array size.
    tr = max(32, _round_up(min(int(tile_rows), _round_up(rows, 32)), 32))
    total_blocks = int(pl.cdiv(rows, tr))
    splits = max(1, int(num_core_splits))
    tiles_per_split = int(pl.cdiv(total_blocks, splits))

    def idx(s, i):
        # Clamp fully-out-of-range logical tiles onto the last real block; the
        # in-kernel mask (computed from the *logical* tile index) zeroes them.
        blk = jnp.minimum(s * tiles_per_split + i, total_blocks - 1)
        return (blk, 0)

    kernel = functools.partial(
        _focal_loss_kernel, n_valid=n, tiles_per_split=tiles_per_split,
        tile_rows=tr, gamma=float(gamma), alpha0=ALPHA0, alpha1=ALPHA1)

    n_total = rows * 128
    logit_itemsize = jnp.dtype(logits.dtype).itemsize

    partials = pl.pallas_call(
        kernel,
        out_shape=jax.ShapeDtypeStruct((splits, 1, 1), jnp.float32),
        grid_spec=pltpu.PrefetchScalarGridSpec(
            num_scalar_prefetch=0,
            grid=(splits, tiles_per_split),
            in_specs=[
                pl.BlockSpec((tr, 128), idx),
                pl.BlockSpec((tr, 128), idx),
                pl.BlockSpec((tr, 128), idx),
            ],
            out_specs=pl.BlockSpec((1, 1, 1), lambda s, i: (s, 0, 0)),
            scratch_shapes=[pltpu.VMEM((tr, 128), jnp.float32)],
        ),
        compiler_params=pltpu.CompilerParams(
            dimension_semantics=("parallel", "arbitrary")),
        cost_estimate=pl.CostEstimate(
            flops=16 * n_total,
            transcendentals=3 * n_total,
            bytes_accessed=n_total * (2 * logit_itemsize + 1) + 4 * splits),
    )(x0, x1, lab)

    # size_average=True -> mean over the real (unpadded) samples.
    return jnp.sum(partials) / jnp.float32(n)


def _reference(logits, labels, mode="all", gamma=GAMMA):
    # Pure-JAX reference mirroring the PyTorch forward, for sanity checking.
    B, V, C = logits.shape
    if mode == "all":
        x = logits.reshape(B * V, C).astype(jnp.float32)
        y = jnp.repeat(labels, V)
    else:
        x = logits[:, 0, :].astype(jnp.float32)
        y = labels
    logp = jax.nn.log_softmax(x, axis=1)
    logpt = jnp.take_along_axis(logp, y[:, None], axis=1)[:, 0]
    pt = jnp.exp(logpt)
    alpha = jnp.array([ALPHA0, ALPHA1], dtype=jnp.float32)
    at = alpha[y]
    loss = -1.0 * (1.0 - pt) ** gamma * (logpt * at)
    return jnp.mean(loss)


if __name__ == "__main__":
    key = jax.random.PRNGKey(0)
    k1, k2, k3, k4 = jax.random.split(key, 4)

    # Small binary multiview problem (C=2: the module's alpha has 2 entries).
    B, V, C = 2, 8, 2
    logits = jax.random.normal(k1, (B, V, C), dtype=jnp.float32)
    labels = jax.random.randint(k2, (B,), 0, C, dtype=jnp.int32)

    for mode in ("all", "one"):
        loss = jax.block_until_ready(multiview_focal_loss(logits, labels, mode=mode))
        ref = _reference(logits, labels, mode=mode)
        assert jnp.allclose(loss, ref, rtol=1e-5, atol=1e-6), (mode, loss, ref)

    # Larger case exercising multi-tile accumulation per split, the partial
    # trailing block, lane padding in the last row, and the clamped
    # fully-out-of-range logical tile on the second split.
    B2, V2 = 300, 37
    logits2 = jax.random.normal(k3, (B2, V2, C), dtype=jnp.float32) * 3.0
    labels2 = jax.random.randint(k4, (B2,), 0, C, dtype=jnp.int32)
    loss2 = jax.block_until_ready(
        multiview_focal_loss(logits2, labels2, mode="all", tile_rows=32))
    ref2 = _reference(logits2, labels2, mode="all")
    assert jnp.allclose(loss2, ref2, rtol=1e-5, atol=1e-6), (loss2, ref2)

    # bf16 logits pass through untouched; cast to f32 happens inside the kernel.
    logits_bf16 = logits2.astype(jnp.bfloat16)
    loss3 = jax.block_until_ready(
        multiview_focal_loss(logits_bf16, labels2, mode="all", tile_rows=32))
    ref3 = _reference(logits_bf16, labels2, mode="all")
    assert jnp.allclose(loss3, ref3, rtol=1e-4, atol=1e-5), (loss3, ref3)

    print("KERNEL_OK")
</pallas_src>

<mosaic_0001>
module attributes {stable_mosaic.version = 11 : i64} {
  func.func @_focal_loss_kernel(%arg0: i32, %arg1: i32, %arg2: memref<32x128xf32, #tpu.memory_space<vmem>>, %arg3: memref<32x128xf32, #tpu.memory_space<vmem>>, %arg4: memref<32x128xi8, #tpu.memory_space<vmem>>, %arg5: memref<1x1x1xf32, #tpu.memory_space<vmem>>, %arg6: memref<32x128xf32, #tpu.memory_space<vmem>>) attributes {dimension_semantics = [#tpu.dimension_semantics<parallel>, #tpu.dimension_semantics<arbitrary>], iteration_bounds = array<i64: 2, 1>, scalar_prefetch = 0 : i64, scratch_operands = 1 : i64, tpu.core_type = #tpu.core_type<tc>, window_params = [{transform_indices = @transform_0, window_bounds = array<i64: 32, 128>}, {transform_indices = @transform_1, window_bounds = array<i64: 32, 128>}, {transform_indices = @transform_2, window_bounds = array<i64: 32, 128>}, {transform_indices = @transform_3, window_bounds = array<i64: 1, 1, 1>}]} {
    %c0_i32 = arith.constant 0 : i32
    %0 = arith.cmpi eq, %arg1, %c0_i32 : i32
    %1 = arith.extui %0 : i1 to i32
    %c0_i32_0 = arith.constant 0 : i32
    %2 = arith.cmpi ne, %1, %c0_i32_0 : i32
    scf.if %2 {
      %cst_21 = arith.constant 0.000000e+00 : f32
      %49 = vector.broadcast %cst_21 : f32 to vector<32x128xf32>
      %c0_22 = arith.constant 0 : index
      %c0_23 = arith.constant 0 : index
      %50 = vector.load %arg6[%c0_22, %c0_23] : memref<32x128xf32, #tpu.memory_space<vmem>>, vector<32x128xf32>
      tpu.vector_store %arg6[%c0_22, %c0_23], %49 {strides = array<i32>} : memref<32x128xf32, #tpu.memory_space<vmem>>, vector<32x128xf32>,
      %cst_24 = arith.constant 0.000000e+00 : f32
      %51 = vector.broadcast %cst_24 : f32 to vector<1x1x1xf32>
      %c0_25 = arith.constant 0 : index
      %c0_26 = arith.constant 0 : index
      %c0_27 = arith.constant 0 : index
      %52 = vector.load %arg5[%c0_25, %c0_26, %c0_27] : memref<1x1x1xf32, #tpu.memory_space<vmem>>, vector<1x1x1xf32>
      tpu.vector_store %arg5[%c0_25, %c0_26, %c0_27], %51 {strides = array<i32>} : memref<1x1x1xf32, #tpu.memory_space<vmem>>, vector<1x1x1xf32>,
    } else {
    }
    %c0 = arith.constant 0 : index
    %c0_1 = arith.constant 0 : index
    %3 = vector.load %arg2[%c0, %c0_1] : memref<32x128xf32, #tpu.memory_space<vmem>>, vector<32x128xf32>
    %c0_2 = arith.constant 0 : index
    %c0_3 = arith.constant 0 : index
    %4 = vector.load %arg3[%c0_2, %c0_3] : memref<32x128xf32, #tpu.memory_space<vmem>>, vector<32x128xf32>
    %c0_4 = arith.constant 0 : index
    %c0_5 = arith.constant 0 : index
    %5 = vector.load %arg4[%c0_4, %c0_5] : memref<32x128xi8, #tpu.memory_space<vmem>>, vector<32x128xi8>
    %6 = arith.extsi %5 : vector<32x128xi8> to vector<32x128xi32>
    %c0_i32_6 = arith.constant 0 : i32
    %7 = vector.broadcast %c0_i32_6 : i32 to vector<32x128xi32>
    %8 = arith.cmpi eq, %6, %7 : vector<32x128xi32>
    %9 = arith.select %8, %3, %4 : vector<32x128xi1>, vector<32x128xf32>
    %10 = arith.select %8, %4, %3 : vector<32x128xi1>, vector<32x128xf32>
    %11 = arith.subf %10, %9 : vector<32x128xf32>
    %12 = math.absf %11 : vector<32x128xf32>
    %cst = arith.constant 0.000000e+00 : f32
    %13 = vector.broadcast %cst : f32 to vector<32x128xf32>
    %14 = arith.subf %13, %12 : vector<32x128xf32>
    %15 = math.exp %14 : vector<32x128xf32>
    %cst_7 = arith.constant 0.000000e+00 : f32
    %16 = vector.broadcast %cst_7 : f32 to vector<32x128xf32>
    %17 = arith.maximumf %11, %16 : vector<32x128xf32>
    %cst_8 = arith.constant 1.000000e+00 : f32
    %18 = vector.broadcast %cst_8 : f32 to vector<32x128xf32>
    %19 = arith.addf %18, %15 : vector<32x128xf32>
    %20 = math.log %19 : vector<32x128xf32>
    %21 = arith.addf %17, %20 : vector<32x128xf32>
    %cst_9 = arith.constant 0.000000e+00 : f32
    %22 = vector.broadcast %cst_9 : f32 to vector<32x128xf32>
    %23 = arith.subf %22, %21 : vector<32x128xf32>
    %24 = math.exp %23 : vector<32x128xf32>
    %cst_10 = arith.constant 0.462686568 : f32
    %cst_11 = arith.constant 0.537313461 : f32
    %25 = vector.broadcast %cst_10 : f32 to vector<32x128xf32>
    %26 = vector.broadcast %cst_11 : f32 to vector<32x128xf32>
    %27 = arith.select %8, %25, %26 : vector<32x128xi1>, vector<32x128xf32>
    %cst_12 = arith.constant 1.000000e+00 : f32
    %28 = vector.broadcast %cst_12 : f32 to vector<32x128xf32>
    %29 = arith.subf %28, %24 : vector<32x128xf32>
    %30 = arith.mulf %29, %29 : vector<32x128xf32>
    %cst_13 = arith.constant 0.000000e+00 : f32
    %31 = vector.broadcast %cst_13 : f32 to vector<32x128xf32>
    %32 = arith.subf %31, %30 : vector<32x128xf32>
    %33 = arith.mulf %23, %27 : vector<32x128xf32>
    %34 = arith.mulf %32, %33 : vector<32x128xf32>
    %c1_i32 = arith.constant 1 : i32
    %35 = arith.muli %arg0, %c1_i32 : i32
    %36 = arith.addi %35, %arg1 : i32
    %c4096_i32 = arith.constant 4096 : i32
    %37 = arith.muli %36, %c4096_i32 : i32
    %c4096_i32_14 = arith.constant 4096 : i32
    %38 = arith.addi %37, %c4096_i32_14 : i32
    %c16_i32 = arith.constant 16 : i32
    %39 = arith.cmpi sle, %38, %c16_i32 : i32
    %40 = arith.extui %39 : i1 to i32
    %c0_i32_15 = arith.constant 0 : i32
    %41 = arith.cmpi ne, %40, %c0_i32_15 : i32
    scf.if %41 {
      %c0_21 = arith.constant 0 : index
      %c0_22 = arith.constant 0 : index
      %49 = vector.load %arg6[%c0_21, %c0_22] : memref<32x128xf32, #tpu.memory_space<vmem>>, vector<32x128xf32>
      %50 = arith.addf %49, %34 : vector<32x128xf32>
      %c0_23 = arith.constant 0 : index
      %c0_24 = arith.constant 0 : index
      %51 = vector.load %arg6[%c0_23, %c0_24] : memref<32x128xf32, #tpu.memory_space<vmem>>, vector<32x128xf32>
      tpu.vector_store %arg6[%c0_23, %c0_24], %50 {strides = array<i32>} : memref<32x128xf32, #tpu.memory_space<vmem>>, vector<32x128xf32>,
    } else {
    }
    %c4096_i32_16 = arith.constant 4096 : i32
    %42 = arith.addi %37, %c4096_i32_16 : i32
    %c16_i32_17 = arith.constant 16 : i32
    %43 = arith.cmpi sgt, %42, %c16_i32_17 : i32
    %44 = arith.extui %43 : i1 to i32
    %c0_i32_18 = arith.constant 0 : i32
    %45 = arith.cmpi ne, %44, %c0_i32_18 : i32
    scf.if %45 {
      %49 = tpu.iota {dimensions = array<i32: 0>} : vector<32x128xi32>
      %50 = tpu.iota {dimensions = array<i32: 1>} : vector<32x128xi32>
      %c128_i32 = arith.constant 128 : i32
      %51 = vector.broadcast %c128_i32 : i32 to vector<32x128xi32>
      %52 = arith.muli %49, %51 : vector<32x128xi32>
      %53 = vector.broadcast %37 : i32 to vector<32x128xi32>
      %54 = arith.addi %53, %52 : vector<32x128xi32>
      %55 = arith.addi %54, %50 : vector<32x128xi32>
      %c0_21 = arith.constant 0 : index
      %c0_22 = arith.constant 0 : index
      %56 = vector.load %arg6[%c0_21, %c0_22] : memref<32x128xf32, #tpu.memory_space<vmem>>, vector<32x128xf32>
      %c16_i32_23 = arith.constant 16 : i32
      %57 = vector.broadcast %c16_i32_23 : i32 to vector<32x128xi32>
      %58 = arith.cmpi slt, %55, %57 : vector<32x128xi32>
      %cst_24 = arith.constant 0.000000e+00 : f32
      %59 = vector.broadcast %cst_24 : f32 to vector<32x128xf32>
      %60 = arith.select %58, %34, %59 : vector<32x128xi1>, vector<32x128xf32>
      %61 = arith.addf %56, %60 : vector<32x128xf32>
      %c0_25 = arith.constant 0 : index
      %c0_26 = arith.constant 0 : index
      %62 = vector.load %arg6[%c0_25, %c0_26] : memref<32x128xf32, #tpu.memory_space<vmem>>, vector<32x128xf32>
      tpu.vector_store %arg6[%c0_25, %c0_26], %61 {strides = array<i32>} : memref<32x128xf32, #tpu.memory_space<vmem>>, vector<32x128xf32>,
    } else {
    }
    %c0_i32_19 = arith.constant 0 : i32
    %46 = arith.cmpi eq, %arg1, %c0_i32_19 : i32
    %47 = arith.extui %46 : i1 to i32
    %c0_i32_20 = arith.constant 0 : i32
    %48 = arith.cmpi ne, %47, %c0_i32_20 : i32
    scf.if %48 {
      %cst_21 = arith.constant 0.000000e+00 : f32
      %49 = vector.broadcast %cst_21 : f32 to vector<1x1x1xf32>
      %c0_22 = arith.constant 0 : index
      %c0_23 = arith.constant 0 : index
      %50 = vector.load %arg6[%c0_22, %c0_23] : memref<32x128xf32, #tpu.memory_space<vmem>>, vector<32x128xf32>
      %51 = vector.shape_cast %50 : vector<32x128xf32> to vector<1x32x128xf32>
      %cst_24 = arith.constant dense<0.000000e+00> : vector<1xf32>
      %52 = vector.multi_reduction <add>, %51, %cst_24 [1, 2] : vector<1x32x128xf32> to vector<1xf32>
      %53 = vector.shape_cast %52 : vector<1xf32> to vector<1x1x1xf32>
      %54 = vector.extract %53[0, 0, 0] : f32 from vector<1x1x1xf32>
      %55 = vector.broadcast %54 : f32 to vector<1x1x1xf32>
      %56 = arith.addf %49, %55 : vector<1x1x1xf32>
      %c0_25 = arith.constant 0 : index
      %c0_26 = arith.constant 0 : index
      %c0_27 = arith.constant 0 : index
      %57 = vector.load %arg5[%c0_25, %c0_26, %c0_27] : memref<1x1x1xf32, #tpu.memory_space<vmem>>, vector<1x1x1xf32>
      tpu.vector_store %arg5[%c0_25, %c0_26, %c0_27], %56 {strides = array<i32>} : memref<1x1x1xf32, #tpu.memory_space<vmem>>, vector<1x1x1xf32>,
    } else {
    }
    return
  }
  func.func @transform_0(%arg0: i32, %arg1: i32) -> (i32, i32) {
    %c1_i32 = arith.constant 1 : i32
    %0 = arith.muli %arg0, %c1_i32 : i32
    %1 = arith.addi %0, %arg1 : i32
    %c0_i32 = arith.constant 0 : i32
    %2 = arith.minsi %1, %c0_i32 : i32
    %c0_i32_0 = arith.constant 0 : i32
    %c0_i32_1 = arith.constant 0 : i32
    return %2, %c0_i32_0 : i32, i32
  }
  func.func @transform_1(%arg0: i32, %arg1: i32) -> (i32, i32) {
    %c1_i32 = arith.constant 1 : i32
    %0 = arith.muli %arg0, %c1_i32 : i32
    %1 = arith.addi %0, %arg1 : i32
    %c0_i32 = arith.constant 0 : i32
    %2 = arith.minsi %1, %c0_i32 : i32
    %c0_i32_0 = arith.constant 0 : i32
    %c0_i32_1 = arith.constant 0 : i32
    return %2, %c0_i32_0 : i32, i32
  }
  func.func @transform_2(%arg0: i32, %arg1: i32) -> (i32, i32) {
    %c1_i32 = arith.constant 1 : i32
    %0 = arith.muli %arg0, %c1_i32 : i32
    %1 = arith.addi %0, %arg1 : i32
    %c0_i32 = arith.constant 0 : i32
    %2 = arith.minsi %1, %c0_i32 : i32
    %c0_i32_0 = arith.constant 0 : i32
    %c0_i32_1 = arith.constant 0 : i32
    return %2, %c0_i32_0 : i32, i32
  }
  func.func @transform_3(%arg0: i32, %arg1: i32) -> (i32, i32, i32) {
    %c0_i32 = arith.constant 0 : i32
    %c0_i32_0 = arith.constant 0 : i32
    %c0_i32_1 = arith.constant 0 : i32
    return %arg0, %c0_i32, %c0_i32_0 : i32, i32, i32
  }
}

</mosaic_0001>

<llo_original>
// kernel: tpu_custom_call.1
$region0: #{tpu_custom_call.1}
  #allocation0 [shape = 'u32[]', space=smem, size = 0x4, offset = 0x4, fixed_abs, tag = 'smem constant byte address 0x4 - core index']
  #allocation1 [shape = 'u32[72,128]{1,0:T(1,128)}', space=vmem, size = 0x9000, scoped, tag = 'internal scratch']
  #allocation2 [shape = 'f32[32,128]{1,0:T(8,128)}', space=vmem, size = 0x4000, scoped, tag = 'scratch operand']
  %s0 = inlined_call_operand.hbm [shape: f32[1,128], index: 0, kind: input, shape index: {}]
  %s1 = inlined_call_operand.hbm [shape: f32[1,128], index: 1, kind: input, shape index: {}]
  %s2 = inlined_call_operand.vmem [shape: s8[1,128], index: 2, kind: input, shape index: {}]
  %s3 = inlined_call_operand.vmem [shape: f32[2,1,1], index: 3, kind: output, shape index: {}]
  %s4 = sld [smem:[#allocation0]]
  $region69: #{tpu_custom_call.1} parent=0
    _
  %s6 = ssub.s32 1, %s4
  %s7 = scalar_select 0, %s6, %s4
  $region1: #{tpu_custom_call.1} parent=0
    #allocation3 [shape = 'u8[32768]{0}', space=vmem, size = 0x8000, scoped, tag = 'input window, operand 0']
    #allocation4 [shape = 's32[2]{0}', space=sflag, size = 0x8, scoped, tag = 'scoped memory for tpu_custom_call.1']
    #allocation5 [shape = 'u8[32768]{0}', space=vmem, size = 0x8000, scoped, tag = 'input window, operand 1']
    #allocation6 [shape = 's32[2]{0}', space=sflag, size = 0x8, scoped, tag = 'scoped memory for tpu_custom_call.1']
    %8 = vsyncpa [#allocation4], 0
    %s9 = scalar_lea.sflag [#allocation4], 1
    %10 = vsyncpa %s9, 0
    %11 = vsyncpa [#allocation6], 0
    %s12 = scalar_lea.sflag [#allocation6], 1
    %13 = vsyncpa %s12, 0
    loop: start=0, step=1, limit=4
    $region2: #{tpu_custom_call.1} parent=1 // loop_pre_header
      _
    $region3: #{tpu_custom_call.1} parent=1 // loop_header
      %s15 = sphi 0, %s19
      %p16 = scmp.ge.s32.totalorder %s15, 4
      %s22 = sphi 0, %s34
      %s23 = sphi 0, %s30
      %s24 = sphi 0, %s22
      %s25 = sphi 0, %s23
      %s26 = sphi 0, %s24
      %s27 = sphi 0, %s25
      %s43 = sphi 0, %s45
      %s46 = sphi 0, %s43
      %s47 = sphi 0, %s46
      %s63 = sphi 0, %s47
      %s75 = sphi 0, %s77
      %s78 = sphi 0, %s75
      %s79 = sphi 0, %s78
      %s95 = sphi 0, %s79
      %s107 = sphi 0, %s109
      %s110 = sphi 0, %s107
      %s111 = sphi 0, %s110
      %s127 = sphi 0, %s111
      %s133 = sphi 0, %s135
      %s136 = sphi 0, %s133
      %s137 = sphi 0, %s136
      %s153 = sphi 0, %s137
    $region4: #{tpu_custom_call.1} parent=1 // loop_header_branch
      %18 = sbr.rel (%p16) target = $region8
    $region5: #{tpu_custom_call.1} parent=1 // loop_body
      %s20 = ssub.s32 %s15, 1
      %s21 = ssub.s32 %s15, 2
      %s28 = sadd.s32 1, %s23
      %p29 = scmp.ge.s32.totalorder %s28, 1
      %s30 = scalar_select %p29, 0, %s28
      %s31 = sadd.s32 1, %s22
      %s32 = scalar_select %p29, %s31, %s22
      %p33 = scmp.ge.s32.totalorder %s32, 2
      %s34 = scalar_select %p33, 0, %s32
      %s35 = sadd.s32 %s22, %s23
      %p36 = scmp.lt.s32.totalorder %s35, 0
      %s37 = scalar_select %p36, %s35, 0
      %s38 = sadd.s32 %s34, %s30
      %p39 = scmp.lt.s32.totalorder %s38, 0
      %s40 = scalar_select %p39, %s38, 0
      %s41 = ssub.s32 %s37, %s40
      %p42 = scmp.eq.s32.totalorder %s41, 0
      %s44 = sadd.s32 %s43, 1
      %s45 = scalar_select %p42, %s43, %s44
      %p48 = pneg %p42
      %p49 = scmp.eq.s32.totalorder %s15, 1
      %p50 = por %p48, %p49
      %p51 = scmp.ne.s32.totalorder %s43, %s46
      %p52 = scmp.eq.s32.totalorder %s15, 0
      %p53 = por %p51, %p52
      %p54 = scmp.ne.s32.totalorder %s43, %s46
      %p55 = scmp.eq.s32.totalorder %s20, 1
      %p56 = por %p54, %p55
      %p57 = scmp.ne.s32.totalorder %s46, %s47
      %p58 = scmp.eq.s32.totalorder %s20, 0
      %p59 = por %p57, %p58
      %p60 = scmp.ne.s32.totalorder %s46, %s47
      %p61 = scmp.eq.s32.totalorder %s21, 1
      %p62 = por %p60, %p61
      %p64 = scmp.ne.s32.totalorder %s47, %s63
      %p65 = scmp.eq.s32.totalorder %s21, 0
      %p66 = por %p64, %p65
      %s67 = sadd.s32 %s22, %s23
      %p68 = scmp.lt.s32.totalorder %s67, 0
      %s69 = scalar_select %p68, %s67, 0
      %s70 = sadd.s32 %s34, %s30
      %p71 = scmp.lt.s32.totalorder %s70, 0
      %s72 = scalar_select %p71, %s70, 0
      %s73 = ssub.s32 %s69, %s72
      %p74 = scmp.eq.s32.totalorder %s73, 0
      %s76 = sadd.s32 %s75, 1
      %s77 = scalar_select %p74, %s75, %s76
      %p80 = pneg %p74
      %p81 = scmp.eq.s32.totalorder %s15, 1
      %p82 = por %p80, %p81
      %p83 = scmp.ne.s32.totalorder %s75, %s78
      %p84 = scmp.eq.s32.totalorder %s15, 0
      %p85 = por %p83, %p84
      %p86 = scmp.ne.s32.totalorder %s75, %s78
      %p87 = scmp.eq.s32.totalorder %s20, 1
      %p88 = por %p86, %p87
      %p89 = scmp.ne.s32.totalorder %s78, %s79
      %p90 = scmp.eq.s32.totalorder %s20, 0
      %p91 = por %p89, %p90
      %p92 = scmp.ne.s32.totalorder %s78, %s79
      %p93 = scmp.eq.s32.totalorder %s21, 1
      %p94 = por %p92, %p93
      %p96 = scmp.ne.s32.totalorder %s79, %s95
      %p97 = scmp.eq.s32.totalorder %s21, 0
      %p98 = por %p96, %p97
      %s99 = sadd.s32 %s22, %s23
      %p100 = scmp.lt.s32.totalorder %s99, 0
      %s101 = scalar_select %p100, %s99, 0
      %s102 = sadd.s32 %s34, %s30
      %p103 = scmp.lt.s32.totalorder %s102, 0
      %s104 = scalar_select %p103, %s102, 0
      %s105 = ssub.s32 %s101, %s104
      %p106 = scmp.eq.s32.totalorder %s105, 0
      %s108 = sadd.s32 %s107, 1
      %s109 = scalar_select %p106, %s107, %s108
      %p112 = pneg %p106
      %p113 = scmp.eq.s32.totalorder %s15, 1
      %p114 = por %p112, %p113
      %p115 = scmp.ne.s32.totalorder %s107, %s110
      %p116 = scmp.eq.s32.totalorder %s15, 0
      %p117 = por %p115, %p116
      %p118 = scmp.ne.s32.totalorder %s107, %s110
      %p119 = scmp.eq.s32.totalorder %s20, 1
      %p120 = por %p118, %p119
      %p121 = scmp.ne.s32.totalorder %s110, %s111
      %p122 = scmp.eq.s32.totalorder %s20, 0
      %p123 = por %p121, %p122
      %p124 = scmp.ne.s32.totalorder %s110, %s111
      %p125 = scmp.eq.s32.totalorder %s21, 1
      %p126 = por %p124, %p125
      %p128 = scmp.ne.s32.totalorder %s111, %s127
      %p129 = scmp.eq.s32.totalorder %s21, 0
      %p130 = por %p128, %p129
      %s131 = ssub.s32 %s22, %s34
      %p132 = scmp.eq.s32.totalorder %s131, 0
      %s134 = sadd.s32 %s133, 1
      %s135 = scalar_select %p132, %s133, %s134
      %p138 = pneg %p132
      %p139 = scmp.eq.s32.totalorder %s15, 1
      %p140 = por %p138, %p139
      %p141 = scmp.ne.s32.totalorder %s133, %s136
      %p142 = scmp.eq.s32.totalorder %s15, 0
      %p143 = por %p141, %p142
      %p144 = scmp.ne.s32.totalorder %s133, %s136
      %p145 = scmp.eq.s32.totalorder %s20, 1
      %p146 = por %p144, %p145
      %p147 = scmp.ne.s32.totalorder %s136, %s137
      %p148 = scmp.eq.s32.totalorder %s20, 0
      %p149 = por %p147, %p148
      %p150 = scmp.ne.s32.totalorder %s136, %s137
      %p151 = scmp.eq.s32.totalorder %s21, 1
      %p152 = por %p150, %p151
      %p154 = scmp.ne.s32.totalorder %s137, %s153
      %p155 = scmp.eq.s32.totalorder %s21, 0
      %p156 = por %p154, %p155
      %p157 = scmp.le.s32.totalorder 1, %s15
      %p158 = scmp.lt.s32.totalorder %s15, 3
      %p159 = pnand %p157, %p158
      %p160 = pneg %p159
      // Predicated region
      $region9: #{tpu_custom_call.1} parent=5 // pred_check
        _
      $region10: #{tpu_custom_call.1} parent=5 // pred_check_branch
        %162 = sbr.rel (%p159) target = $region12
      $region11: #{tpu_custom_call.1} parent=5 // pred_region
        %s163 = ssub.s32 %s15, 1
      $region12: #{tpu_custom_call.1} parent=5 // pred_fallthru
        _
      %p164 = scmp.lt.s32.totalorder %s15, 2
      // Predicated region
      $region13: #{tpu_custom_call.1} parent=5 // pred_check
        %p165 = pneg %p164
      $region14: #{tpu_custom_call.1} parent=5 // pred_check_branch
        %167 = sbr.rel (%p165) target = $region16
      $region15: #{tpu_custom_call.1} parent=5 // pred_region
        // Predicated region
        $region17: #{tpu_custom_call.1} parent=15 // pred_check
          %p168 = pneg %p53
        $region18: #{tpu_custom_call.1} parent=15 // pred_check_branch
          %170 = sbr.rel (%p168) target = $region20
        $region19: #{tpu_custom_call.1} parent=15 // pred_region
          %s171 = sand.u32 %s43, 1
          %s172 = scalar_lea.sflag [#allocation4], %s171
          %s173 = sand.u32 %s43, 1
          %s174 = smul.addr %s173, 32
          %s175 = scalar_lea.vmem [#allocation3], %s174
          %s176 = sadd.s32 %s22, %s23
          %p177 = scmp.lt.s32.totalorder %s176, 0
          %s178 = scalar_select %p177, %s176, 0
          %s179 = smul.u32 32, %s178
          %s180 = ssub.s32 1, %s179
          %s181 = ssub.s32 32, %s180
          %s182 = sshll.u32 %s181, 4
          %183 = vsyncadd %s172, %s182
          %p184 = scmp.ne.s32.totalorder 0, %s180
          %s185 = scalar_lea.hbm %s0, %s179
          %s186 = sshll.u32 %s185, 4
          %s187 = int_to_ptr.hbm [resolvable:$true] %s186
          %s188 = sshll.u32 %s175, 4
          %s189 = int_to_ptr.vmem [resolvable:$true] %s188
          %s190 = sshll.u32 %s180, 4
          %194 = dma.hbm_to_vmem [thread:$0]  (%p184), %s187, %s190, %s189, %s172, 16, 16, 1
        $region20: #{tpu_custom_call.1} parent=15 // pred_fallthru
          _
        // Predicated region
        $region21: #{tpu_custom_call.1} parent=15 // pred_check
          %p195 = pneg %p85
        $region22: #{tpu_custom_call.1} parent=15 // pred_check_branch
          %197 = sbr.rel (%p195) target = $region24
        $region23: #{tpu_custom_call.1} parent=15 // pred_region
          %s198 = sand.u32 %s75, 1
          %s199 = scalar_lea.sflag [#allocation6], %s198
          %s200 = sand.u32 %s75, 1
          %s201 = smul.addr %s200, 32
          %s202 = scalar_lea.vmem [#allocation5], %s201
          %s203 = sadd.s32 %s22, %s23
          %p204 = scmp.lt.s32.totalorder %s203, 0
          %s205 = scalar_select %p204, %s203, 0
          %s206 = smul.u32 32, %s205
          %s207 = ssub.s32 1, %s206
          %s208 = ssub.s32 32, %s207
          %s209 = sshll.u32 %s208, 4
          %210 = vsyncadd %s199, %s209
          %p211 = scmp.ne.s32.totalorder 0, %s207
          %s212 = scalar_lea.hbm %s1, %s206
          %s213 = sshll.u32 %s212, 4
          %s214 = int_to_ptr.hbm [resolvable:$true] %s213
          %s215 = sshll.u32 %s202, 4
          %s216 = int_to_ptr.vmem [resolvable:$true] %s215
          %s217 = sshll.u32 %s207, 4
          %221 = dma.hbm_to_vmem [thread:$0]  (%p211), %s214, %s217, %s216, %s199, 16, 16, 1
        $region24: #{tpu_custom_call.1} parent=15 // pred_fallthru
          _
        // Predicated region
        $region25: #{tpu_custom_call.1} parent=15 // pred_check
          %p222 = pneg %p117
        $region26: #{tpu_custom_call.1} parent=15 // pred_check_branch
          %224 = sbr.rel (%p222) target = $region28
        $region27: #{tpu_custom_call.1} parent=15 // pred_region
          %s225 = sadd.s32 %s22, %s23
          %p226 = scmp.lt.s32.totalorder %s225, 0
          %s227 = scalar_select %p226, %s225, 0
          %s228 = smul.u32 8, %s227
          %s229 = ssub.s32 1, %s228
          %p230 = scmp.lt.s32.totalorder %s228, 0
          %s231 = scalar_select %p230, %s228, 0
          %s232 = scalar_lea.vmem %s2, %s231
          %s233 = sadd.s32 %s22, %s23
          %p234 = scmp.lt.s32.totalorder %s233, 0
          %s235 = scalar_select %p234, %s233, 0
          %s236 = smul.u32 8, %s235
          %s237 = ssub.s32 1, %s236
        $region28: #{tpu_custom_call.1} parent=15 // pred_fallthru
          _
      $region16: #{tpu_custom_call.1} parent=5 // pred_fallthru
        _
      %p238 = scmp.le.s32.totalorder 1, %s15
      %p239 = scmp.lt.s32.totalorder %s15, 3
      %p240 = pnand %p238, %p239
      %p241 = pneg %p240
      // Predicated region
      $region29: #{tpu_custom_call.1} parent=5 // pred_check
        _
      $region30: #{tpu_custom_call.1} parent=5 // pred_check_branch
        %243 = sbr.rel (%p240) target = $region32
      $region31: #{tpu_custom_call.1} parent=5 // pred_region
        %s244 = ssub.s32 %s15, 1
        %s245 = sand.u32 %s46, 1
        %s246 = scalar_lea.sflag [#allocation4], %s245
        %s247 = sand.u32 %s46, 1
        %s248 = smul.addr %s247, 32
        %s249 = scalar_lea.vmem [#allocation3], %s248
        // Predicated region
        $region33: #{tpu_custom_call.1} parent=31 // pred_check
          %p250 = pneg %p59
        $region34: #{tpu_custom_call.1} parent=31 // pred_check_branch
          %252 = sbr.rel (%p250) target = $region36
        $region35: #{tpu_custom_call.1} parent=31 // pred_region
          %254 = dma.done %s246, 512
        $region36: #{tpu_custom_call.1} parent=31 // pred_fallthru
          _
        %s255 = sand.u32 %s78, 1
        %s256 = scalar_lea.sflag [#allocation6], %s255
        %s257 = sand.u32 %s78, 1
        %s258 = smul.addr %s257, 32
        %s259 = scalar_lea.vmem [#allocation5], %s258
        // Predicated region
        $region37: #{tpu_custom_call.1} parent=31 // pred_check
          %p260 = pneg %p91
        $region38: #{tpu_custom_call.1} parent=31 // pred_check_branch
          %262 = sbr.rel (%p260) target = $region40
        $region39: #{tpu_custom_call.1} parent=31 // pred_region
          %264 = dma.done %s256, 512
        $region40: #{tpu_custom_call.1} parent=31 // pred_fallthru
          _
        %s265 = sand.u32 %s46, 1
        %s266 = scalar_lea.sflag [#allocation4], %s265
        %s267 = sand.u32 %s46, 1
        %s268 = smul.addr %s267, 32
        %s269 = scalar_lea.vmem [#allocation3], %s268
        %p270 = pneg %p59
        %p271 = pneg %p56
        %s272 = sand.u32 %s78, 1
        %s273 = scalar_lea.sflag [#allocation6], %s272
        %s274 = sand.u32 %s78, 1
        %s275 = smul.addr %s274, 32
        %s276 = scalar_lea.vmem [#allocation5], %s275
        %p277 = pneg %p91
        %p278 = pneg %p88
        %s279 = sadd.s32 %s24, %s25
        %p280 = scmp.lt.s32.totalorder %s279, 0
        %s281 = scalar_select %p280, %s279, 0
        %s282 = smul.u32 8, %s281
        %s283 = ssub.s32 1, %s282
        %p284 = scmp.lt.s32.totalorder %s282, 0
        %s285 = scalar_select %p284, %s282, 0
        %s286 = scalar_lea.vmem %s2, %s285
        %p287 = pneg %p123
        %p288 = pneg %p120
        %p289 = pneg %p149
        %p290 = pneg %p146
        %p291 = scmp.lt.s32.totalorder %s24, 1
        %s292 = scalar_select %p291, %s24, 1
        %s293 = scalar_lea.vmem %s3, %s292
        %s294 = sadd.s32 %s24, %s25
        %p295 = scmp.lt.s32.totalorder %s294, 0
        %s296 = scalar_select %p295, %s294, 0
        %s297 = smul.u32 32, %s296
        %s298 = ssub.s32 1, %s297
        %s299 = sadd.s32 %s24, %s25
        %p300 = scmp.lt.s32.totalorder %s299, 0
        %s301 = scalar_select %p300, %s299, 0
        %s302 = smul.u32 32, %s301
        %s303 = ssub.s32 1, %s302
        %s304 = sadd.s32 %s24, %s25
        %p305 = scmp.lt.s32.totalorder %s304, 0
        %s306 = scalar_select %p305, %s304, 0
        %s307 = smul.u32 8, %s306
        %s308 = ssub.s32 1, %s307
        %p309 = scmp.lt.s32.totalorder %s307, 0
        %s310 = scalar_select %p309, %s307, 0
        %s311 = scalar_lea.vmem %s2, %s310
        %s312 = sadd.s32 %s24, %s25
        %p313 = scmp.lt.s32.totalorder %s312, 0
        %s314 = scalar_select %p313, %s312, 0
        %s315 = smul.u32 8, %s314
        %s316 = ssub.s32 1, %s315
        %p317 = scmp.lt.s32.totalorder %s24, 1
        %s318 = scalar_select %p317, %s24, 1
        %s319 = scalar_lea.vmem %s3, %s318
        %p320 = scmp.eq.s32.totalorder %s25, 0
        // Predicated region
        $region41: #{tpu_custom_call.1} parent=31 // pred_check
          %p321 = pneg %p320
        $region42: #{tpu_custom_call.1} parent=31 // pred_check_branch
          %323 = sbr.rel (%p321) target = $region44
        $region43: #{tpu_custom_call.1} parent=31 // pred_region
          %324 = vst [vmem:[#allocation2] sm:$0xff] 0.0
          %325 = vst [vmem:[#allocation2 + $0x8] sm:$0xff] 0.0
          %326 = vst [vmem:[#allocation2 + $0x10] sm:$0xff] 0.0
          %327 = vst [vmem:[#allocation2 + $0x18] sm:$0xff] 0.0
          %vm328 = vcmask 0
          %329 = vst.msk [vmem:[%s319] sm:$0x1] %vm328, 0.0
        $region44: #{tpu_custom_call.1} parent=31 // pred_fallthru
          _
        %v330 = vld [vmem:[%s249] sm:$0xff]
        %v331 = vld [vmem:[%s249 + $0x8] sm:$0xff]
        %v332 = vld [vmem:[%s249 + $0x10] sm:$0xff]
        %v333 = vld [vmem:[%s249 + $0x18] sm:$0xff]
        %v334 = vld [vmem:[%s259] sm:$0xff]
        %v335 = vld [vmem:[%s259 + $0x8] sm:$0xff]
        %v336 = vld [vmem:[%s259 + $0x10] sm:$0xff]
        %v337 = vld [vmem:[%s259 + $0x18] sm:$0xff]
        %v338 = vld [vmem:[%s311] sm:$0x1]
        %v339 = vld [vmem:[%s311 + $0x1] sm:$0x1]
        %v340 = vld [vmem:[%s311 + $0x2] sm:$0x1]
        %v341 = vld [vmem:[%s311 + $0x3] sm:$0x1]
        %v342 = vld [vmem:[%s311 + $0x4] sm:$0x1]
        %v343 = vld [vmem:[%s311 + $0x5] sm:$0x1]
        %v344 = vld [vmem:[%s311 + $0x6] sm:$0x1]
        %v345 = vld [vmem:[%s311 + $0x7] sm:$0x1]
        %v346 = vunpack.c.0.s8 %v338
        %v347 = vunpack.c.0.s8 %v339
        %v348 = vunpack.c.0.s8 %v340
        %v349 = vunpack.c.0.s8 %v341
        %v350 = vunpack.c.0.s8 %v342
        %v351 = vunpack.c.0.s8 %v343
        %v352 = vunpack.c.0.s8 %v344
        %v353 = vunpack.c.0.s8 %v345
        %vm354 = vcmp.eq.s32.totalorder %v346, 0
        %vm355 = vcmp.eq.s32.totalorder %v347, 0
        %vm356 = vcmp.eq.s32.totalorder %v348, 0
        %vm357 = vcmp.eq.s32.totalorder %v349, 0
        %vm358 = vcmp.eq.s32.totalorder %v350, 0
        %vm359 = vcmp.eq.s32.totalorder %v351, 0
        %vm360 = vcmp.eq.s32.totalorder %v352, 0
        %vm361 = vcmp.eq.s32.totalorder %v353, 0
        %v366 = vrot.slane %v330, 4
        %v367 = vrot.slane %v331, 4
        %v368 = vrot.slane %v332, 4
        %v369 = vrot.slane %v333, 4
        %v378 = vrot.slane %v334, 4
        %v379 = vrot.slane %v335, 4
        %v380 = vrot.slane %v336, 4
        %v381 = vrot.slane %v337, 4
        %v386 = vsel %vm354, %v330, %v334
        %v387 = vsel %vm355, %v366, %v378
        %v388 = vsel %vm356, %v331, %v335
        %v389 = vsel %vm357, %v367, %v379
        %v390 = vsel %vm358, %v332, %v336
        %v391 = vsel %vm359, %v368, %v380
        %v392 = vsel %vm360, %v333, %v337
        %v393 = vsel %vm361, %v369, %v381
        %v394 = vsel %vm354, %v334, %v330
        %v395 = vsel %vm355, %v378, %v366
        %v396 = vsel %vm356, %v335, %v331
        %v397 = vsel %vm357, %v379, %v367
        %v398 = vsel %vm358, %v336, %v332
        %v399 = vsel %vm359, %v380, %v368
        %v400 = vsel %vm360, %v337, %v333
        %v401 = vsel %vm361, %v381, %v369
        %v402 = vsub.f32 %v394, %v386
        %v403 = vsub.f32 %v395, %v387
        %v404 = vsub.f32 %v396, %v388
        %v405 = vsub.f32 %v397, %v389
        %v406 = vsub.f32 %v398, %v390
        %v407 = vsub.f32 %v399, %v391
        %v408 = vsub.f32 %v400, %v392
        %v409 = vsub.f32 %v401, %v393
        %v410 = vand.u32 2147483647, %v402
        %v411 = vand.u32 2147483647, %v403
        %v412 = vand.u32 2147483647, %v404
        %v413 = vand.u32 2147483647, %v405
        %v414 = vand.u32 2147483647, %v406
        %v415 = vand.u32 2147483647, %v407
        %v416 = vand.u32 2147483647, %v408
        %v417 = vand.u32 2147483647, %v409
        %v418 = vsub.f32 0.0, %v410
        %v419 = vsub.f32 0.0, %v411
        %v420 = vsub.f32 0.0, %v412
        %v421 = vsub.f32 0.0, %v413
        %v422 = vsub.f32 0.0, %v414
        %v423 = vsub.f32 0.0, %v415
        %v424 = vsub.f32 0.0, %v416
        %v425 = vsub.f32 0.0, %v417
        %v426 = vmul.f32 %v418, 1.442695
        %v427 = vpow.pop %v426
        %v428 = vmul.f32 %v419, 1.442695
        %v429 = vpow.pop %v428
        %v430 = vmul.f32 %v420, 1.442695
        %v431 = vpow.pop %v430
        %v432 = vmul.f32 %v421, 1.442695
        %v433 = vpow.pop %v432
        %v434 = vmul.f32 %v422, 1.442695
        %v435 = vpow.pop %v434
        %v436 = vmul.f32 %v423, 1.442695
        %v437 = vpow.pop %v436
        %v438 = vmul.f32 %v424, 1.442695
        %v439 = vpow.pop %v438
        %v440 = vmul.f32 %v425, 1.442695
        %v441 = vpow.pop %v440
        %v442 = vmax.f32 %v402, 0.0
        %v443 = vmax.f32 %v403, 0.0
        %v444 = vmax.f32 %v404, 0.0
        %v445 = vmax.f32 %v405, 0.0
        %v446 = vmax.f32 %v406, 0.0
        %v447 = vmax.f32 %v407, 0.0
        %v448 = vmax.f32 %v408, 0.0
        %v449 = vmax.f32 %v409, 0.0
        %v450 = vadd.f32 %v427, 1.0
        %v451 = vadd.f32 %v429, 1.0
        %v452 = vadd.f32 %v431, 1.0
        %v453 = vadd.f32 %v433, 1.0
        %v454 = vadd.f32 %v435, 1.0
        %v455 = vadd.f32 %v437, 1.0
        %v456 = vadd.f32 %v439, 1.0
        %v457 = vadd.f32 %v441, 1.0
        %v458 = vlog2.pop %v450
        %v459 = vmul.f32 %v458, 0.6931472
        %v460 = vlog2.pop %v451
        %v461 = vmul.f32 %v460, 0.6931472
        %v462 = vlog2.pop %v452
        %v463 = vmul.f32 %v462, 0.6931472
        %v464 = vlog2.pop %v453
        %v465 = vmul.f32 %v464, 0.6931472
        %v466 = vlog2.pop %v454
        %v467 = vmul.f32 %v466, 0.6931472
        %v468 = vlog2.pop %v455
        %v469 = vmul.f32 %v468, 0.6931472
        %v470 = vlog2.pop %v456
        %v471 = vmul.f32 %v470, 0.6931472
        %v472 = vlog2.pop %v457
        %v473 = vmul.f32 %v472, 0.6931472
        %v474 = vadd.f32 %v442, %v459
        %v475 = vadd.f32 %v443, %v461
        %v476 = vadd.f32 %v444, %v463
        %v477 = vadd.f32 %v445, %v465
        %v478 = vadd.f32 %v446, %v467
        %v479 = vadd.f32 %v447, %v469
        %v480 = vadd.f32 %v448, %v471
        %v481 = vadd.f32 %v449, %v473
        %v482 = vsub.f32 0.0, %v474
        %v483 = vsub.f32 0.0, %v475
        %v484 = vsub.f32 0.0, %v476
        %v485 = vsub.f32 0.0, %v477
        %v486 = vsub.f32 0.0, %v478
        %v487 = vsub.f32 0.0, %v479
        %v488 = vsub.f32 0.0, %v480
        %v489 = vsub.f32 0.0, %v481
        %v490 = vmul.f32 %v482, 1.442695
        %v491 = vpow.pop %v490
        %v492 = vmul.f32 %v483, 1.442695
        %v493 = vpow.pop %v492
        %v494 = vmul.f32 %v484, 1.442695
        %v495 = vpow.pop %v494
        %v496 = vmul.f32 %v485, 1.442695
        %v497 = vpow.pop %v496
        %v498 = vmul.f32 %v486, 1.442695
        %v499 = vpow.pop %v498
        %v500 = vmul.f32 %v487, 1.442695
        %v501 = vpow.pop %v500
        %v502 = vmul.f32 %v488, 1.442695
        %v503 = vpow.pop %v502
        %v504 = vmul.f32 %v489, 1.442695
        %v505 = vpow.pop %v504
        %v506 = vsel %vm354, 0.46268657, 0.53731346
        %v507 = vsel %vm355, 0.46268657, 0.53731346
        %v508 = vsel %vm356, 0.46268657, 0.53731346
        %v509 = vsel %vm357, 0.46268657, 0.53731346
        %v510 = vsel %vm358, 0.46268657, 0.53731346
        %v511 = vsel %vm359, 0.46268657, 0.53731346
        %v512 = vsel %vm360, 0.46268657, 0.53731346
        %v513 = vsel %vm361, 0.46268657, 0.53731346
        %v514 = vsub.f32 1.0, %v491
        %v515 = vsub.f32 1.0, %v493
        %v516 = vsub.f32 1.0, %v495
        %v517 = vsub.f32 1.0, %v497
        %v518 = vsub.f32 1.0, %v499
        %v519 = vsub.f32 1.0, %v501
        %v520 = vsub.f32 1.0, %v503
        %v521 = vsub.f32 1.0, %v505
        %v522 = vmul.f32 %v514, %v514
        %v523 = vmul.f32 %v515, %v515
        %v524 = vmul.f32 %v516, %v516
        %v525 = vmul.f32 %v517, %v517
        %v526 = vmul.f32 %v518, %v518
        %v527 = vmul.f32 %v519, %v519
        %v528 = vmul.f32 %v520, %v520
        %v529 = vmul.f32 %v521, %v521
        %v530 = vsub.f32 0.0, %v522
        %v531 = vsub.f32 0.0, %v523
        %v532 = vsub.f32 0.0, %v524
        %v533 = vsub.f32 0.0, %v525
        %v534 = vsub.f32 0.0, %v526
        %v535 = vsub.f32 0.0, %v527
        %v536 = vsub.f32 0.0, %v528
        %v537 = vsub.f32 0.0, %v529
        %v538 = vmul.f32 %v482, %v506
        %v539 = vmul.f32 %v483, %v507
        %v540 = vmul.f32 %v484, %v508
        %v541 = vmul.f32 %v485, %v509
        %v542 = vmul.f32 %v486, %v510
        %v543 = vmul.f32 %v487, %v511
        %v544 = vmul.f32 %v488, %v512
        %v545 = vmul.f32 %v489, %v513
        %v546 = vmul.f32 %v530, %v538
        %v547 = vmul.f32 %v531, %v539
        %v548 = vmul.f32 %v532, %v540
        %v549 = vmul.f32 %v533, %v541
        %v550 = vmul.f32 %v534, %v542
        %v551 = vmul.f32 %v535, %v543
        %v552 = vmul.f32 %v536, %v544
        %v553 = vmul.f32 %v537, %v545
        %s554 = sadd.s32 %s24, %s25
        %s555 = smul.u32 %s554, 4096
        %s556 = sadd.s32 %s555, 4096
        %p557 = scmp.le.s32.totalorder %s556, 16
        // Predicated region
        $region45: #{tpu_custom_call.1} parent=31 // pred_check
          %p558 = pneg %p557
        $region46: #{tpu_custom_call.1} parent=31 // pred_check_branch
          %560 = sbr.rel (%p558) target = $region48
        $region47: #{tpu_custom_call.1} parent=31 // pred_region
          %v561 = vld [vmem:[#allocation2] sm:$0xff]
          %v562 = vld [vmem:[#allocation2 + $0x8] sm:$0xff]
          %v563 = vld [vmem:[#allocation2 + $0x10] sm:$0xff]
          %v564 = vld [vmem:[#allocation2 + $0x18] sm:$0xff]
          %573 = vst [vmem:[#allocation1] ss:$2 sm:$0xff] %v546
          %s574 = scalar_lea.vmem [#allocation1], 1
          %575 = vst [vmem:[%s574] ss:$2 sm:$0xff] %v547
          %s576 = scalar_lea.vmem [#allocation1], 16
          %577 = vst [vmem:[%s576] ss:$2 sm:$0xff] %v548
          %s578 = scalar_lea.vmem [#allocation1], 17
          %579 = vst [vmem:[%s578] ss:$2 sm:$0xff] %v549
          %s580 = scalar_lea.vmem [#allocation1], 32
          %581 = vst [vmem:[%s580] ss:$2 sm:$0xff] %v550
          %s582 = scalar_lea.vmem [#allocation1], 33
          %583 = vst [vmem:[%s582] ss:$2 sm:$0xff] %v551
          %s584 = scalar_lea.vmem [#allocation1], 48
          %585 = vst [vmem:[%s584] ss:$2 sm:$0xff] %v552
          %s586 = scalar_lea.vmem [#allocation1], 49
          %587 = vst [vmem:[%s586] ss:$2 sm:$0xff] %v553
          %v588 = vld.sshfl [vmem:[#allocation1] sm:$0xff pattern:$0x75316420]
          %v589 = vld.sshfl [vmem:[#allocation1 + $0x10] sm:$0xff pattern:$0x75316420]
          %v590 = vld.sshfl [vmem:[#allocation1 + $0x20] sm:$0xff pattern:$0x75316420]
          %v591 = vld.sshfl [vmem:[#allocation1 + $0x30] sm:$0xff pattern:$0x75316420]
          %v596 = vadd.f32 %v561, %v588
          %v597 = vadd.f32 %v562, %v589
          %v598 = vadd.f32 %v563, %v590
          %v599 = vadd.f32 %v564, %v591
          %600 = vst [vmem:[#allocation2] sm:$0xff] %v596
          %601 = vst [vmem:[#allocation2 + $0x8] sm:$0xff] %v597
          %602 = vst [vmem:[#allocation2 + $0x10] sm:$0xff] %v598
          %603 = vst [vmem:[#allocation2 + $0x18] sm:$0xff] %v599
        $region48: #{tpu_custom_call.1} parent=31 // pred_fallthru
          _
        %p604 = scmp.gt.s32.totalorder %s556, 16
        // Predicated region
        $region49: #{tpu_custom_call.1} parent=31 // pred_check
          %p605 = pneg %p604
        $region50: #{tpu_custom_call.1} parent=31 // pred_check_branch
          %607 = sbr.rel (%p605) target = $region52
        $region51: #{tpu_custom_call.1} parent=31 // pred_region
          %v608 = vlaneseq
          %v609 = vshrl.u32 %v608, 7
          %v610 = vadd.s32 %v609, 8
          %v611 = vadd.s32 %v609, 16
          %v612 = vadd.s32 %v609, 24
          %v613 = vlaneseq
          %v614 = vand.u32 %v613, 127
          %v615 = vmul.u32 %v609, 128
          %v616 = vmul.u32 %v610, 128
          %v617 = vmul.u32 %v611, 128
          %v618 = vmul.u32 %v612, 128
          %v619 = vstv %s555
          %v620 = vadd.s32 %v619, %v615
          %v621 = vadd.s32 %v619, %v616
          %v622 = vadd.s32 %v619, %v617
          %v623 = vadd.s32 %v619, %v618
          %v624 = vadd.s32 %v620, %v614
          %v625 = vadd.s32 %v621, %v614
          %v626 = vadd.s32 %v622, %v614
          %v627 = vadd.s32 %v623, %v614
          %v628 = vld [vmem:[#allocation2] sm:$0xff]
          %v629 = vld [vmem:[#allocation2 + $0x8] sm:$0xff]
          %v630 = vld [vmem:[#allocation2 + $0x10] sm:$0xff]
          %v631 = vld [vmem:[#allocation2 + $0x18] sm:$0xff]
          %vm632 = vcmp.lt.s32.totalorder %v624, 16
          %vm633 = vcmp.lt.s32.totalorder %v625, 16
          %vm634 = vcmp.lt.s32.totalorder %v626, 16
          %vm635 = vcmp.lt.s32.totalorder %v627, 16
          %644 = vst [vmem:[#allocation1] ss:$2 sm:$0xff] %v546
          %s645 = scalar_lea.vmem [#allocation1], 1
          %646 = vst [vmem:[%s645] ss:$2 sm:$0xff] %v547
          %s647 = scalar_lea.vmem [#allocation1], 16
          %648 = vst [vmem:[%s647] ss:$2 sm:$0xff] %v548
          %s649 = scalar_lea.vmem [#allocation1], 17
          %650 = vst [vmem:[%s649] ss:$2 sm:$0xff] %v549
          %s651 = scalar_lea.vmem [#allocation1], 32
          %652 = vst [vmem:[%s651] ss:$2 sm:$0xff] %v550
          %s653 = scalar_lea.vmem [#allocation1], 33
          %654 = vst [vmem:[%s653] ss:$2 sm:$0xff] %v551
          %s655 = scalar_lea.vmem [#allocation1], 48
          %656 = vst [vmem:[%s655] ss:$2 sm:$0xff] %v552
          %s657 = scalar_lea.vmem [#allocation1], 49
          %658 = vst [vmem:[%s657] ss:$2 sm:$0xff] %v553
          %v659 = vld.sshfl [vmem:[#allocation1] sm:$0xff pattern:$0x75316420]
          %v660 = vld.sshfl [vmem:[#allocation1 + $0x10] sm:$0xff pattern:$0x75316420]
          %v661 = vld.sshfl [vmem:[#allocation1 + $0x20] sm:$0xff pattern:$0x75316420]
          %v662 = vld.sshfl [vmem:[#allocation1 + $0x30] sm:$0xff pattern:$0x75316420]
          %v667 = vsel %vm632, %v659, 0.0
          %v668 = vsel %vm633, %v660, 0.0
          %v669 = vsel %vm634, %v661, 0.0
          %v670 = vsel %vm635, %v662, 0.0
          %v671 = vadd.f32 %v628, %v667
          %v672 = vadd.f32 %v629, %v668
          %v673 = vadd.f32 %v630, %v669
          %v674 = vadd.f32 %v631, %v670
          %675 = vst [vmem:[#allocation2] sm:$0xff] %v671
          %676 = vst [vmem:[#allocation2 + $0x8] sm:$0xff] %v672
          %677 = vst [vmem:[#allocation2 + $0x10] sm:$0xff] %v673
          %678 = vst [vmem:[#allocation2 + $0x18] sm:$0xff] %v674
        $region52: #{tpu_custom_call.1} parent=31 // pred_fallthru
          _
        // Predicated region
        $region53: #{tpu_custom_call.1} parent=31 // pred_check
          %p679 = pneg %p320
        $region54: #{tpu_custom_call.1} parent=31 // pred_check_branch
          %681 = sbr.rel (%p679) target = $region56
        $region55: #{tpu_custom_call.1} parent=31 // pred_region
          %v682 = vld [vmem:[#allocation2] sm:$0xff]
          %v683 = vld [vmem:[#allocation2 + $0x8] sm:$0xff]
          %v684 = vld [vmem:[#allocation2 + $0x10] sm:$0xff]
          %v685 = vld [vmem:[#allocation2 + $0x18] sm:$0xff]
          %v686 = vadd.f32 %v682, %v683
          %v687 = vadd.f32 %v686, %v684
          %v688 = vadd.f32 %v687, %v685
          %689 = vadd.xlane.f32.xlu0 %v688
          %v690 = vpop.xlane.xlu0 %689
          %v691 = vrot.slane %v690, 4
          %v692 = vadd.f32 %v690, %v691
          %v693 = vrot.slane %v692, 2
          %v694 = vadd.f32 %v692, %v693
          %v695 = vrot.slane %v694, 1
          %v696 = vadd.f32 %v694, %v695
          %s697 = vtos %v696
          %v698 = vstv %s697
          %v699 = vadd.f32 %v698, 0.0
          %vm700 = vcmask 0
          %701 = vst.msk [vmem:[%s319] sm:$0x1] %vm700, %v699
        $region56: #{tpu_custom_call.1} parent=31 // pred_fallthru
          _
        %p702 = scmp.lt.s32.totalorder %s24, 1
        %s703 = scalar_select %p702, %s24, 1
        %s704 = scalar_lea.vmem %s3, %s703
        // Predicated region
        $region57: #{tpu_custom_call.1} parent=31 // pred_check
          %p705 = pneg %p146
        $region58: #{tpu_custom_call.1} parent=31 // pred_check_branch
          %707 = sbr.rel (%p705) target = $region60
        $region59: #{tpu_custom_call.1} parent=31 // pred_region
          _
        $region60: #{tpu_custom_call.1} parent=31 // pred_fallthru
          _
      $region32: #{tpu_custom_call.1} parent=5 // pred_fallthru
        _
      %p708 = scmp.le.s32.totalorder 2, %s15
      // Predicated region
      $region61: #{tpu_custom_call.1} parent=5 // pred_check
        %p709 = pneg %p708
      $region62: #{tpu_custom_call.1} parent=5 // pred_check_branch
        %711 = sbr.rel (%p709) target = $region64
      $region63: #{tpu_custom_call.1} parent=5 // pred_region
        %s712 = ssub.s32 %s15, 2
        // Predicated region
        $region65: #{tpu_custom_call.1} parent=63 // pred_check
          %p713 = pneg %p152
        $region66: #{tpu_custom_call.1} parent=63 // pred_check_branch
          %715 = sbr.rel (%p713) target = $region68
        $region67: #{tpu_custom_call.1} parent=63 // pred_region
          %p716 = scmp.lt.s32.totalorder %s26, 1
          %s717 = scalar_select %p716, %s26, 1
          %s718 = scalar_lea.vmem %s3, %s717
        $region68: #{tpu_custom_call.1} parent=63 // pred_fallthru
          _
      $region64: #{tpu_custom_call.1} parent=5 // pred_fallthru
        _
    $region6: #{tpu_custom_call.1} parent=1 // loop_footer
      %s19 = sadd.s32 1, %s15
    $region7: #{tpu_custom_call.1} parent=1 // loop_footer_branch
      %14 = sbr.rel target = $region3
    $region8: #{tpu_custom_call.1} parent=1 // loop_exit
      _
    %719 = vsyncpa [#allocation4], 1
    %s720 = scalar_lea.sflag [#allocation4], 1
    %721 = vsyncpa %s720, 1
    %722 = vsyncpa [#allocation6], 1
    %s723 = scalar_lea.sflag [#allocation6], 1
    %724 = vsyncpa %s723, 1

</llo_original>
